<compile_context>
chip_gen: v5e
topology: v5e:2x2
jax: 0.10.0
libtpu: 0.0.40
codegen_flags: <defaults>
</compile_context>

<pallas_src>
import jax
import jax.numpy as jnp
import numpy as np
from jax.experimental import pallas as pl
from jax.experimental.pallas import tpu as pltpu

CHANNELS = 14
FRAME = 64
HIDDEN = 40
FEAT_DIM = 4 * 9 * CHANNELS   # 504 raw feature width
FEAT_PAD = 512                # zero-padded, lane-aligned (multiple of 128)


def _round_up(n, m):
    return ((n + m - 1) // m) * m


# ---------------------------------------------------------------------------
# Pallas kernel: full MLP (trunk + fused heads), one batch tile per grid step
# ---------------------------------------------------------------------------
def _lrelu(v):
    # LeakyReLU(0.05): max(v, 0.05*v) is exact for both signs, stays on the VPU.
    return jnp.maximum(v, 0.05 * v)


def _sigmoid(v):
    # Numerically stable logistic; reciprocal goes to the EUP slot (approx vrcp).
    e = jnp.exp(-jnp.abs(v))
    r = pl.reciprocal(1.0 + e, approx=True)
    return jnp.where(v >= 0, r, e * r)


def mlp_kernel(x_ref,
               w1_ref, b1_ref, w2_ref, b2_ref, w3_ref, b3_ref, w4_ref, b4_ref,
               wh1_ref, bh1_ref, wh2_ref, bh2_ref,
               out_ref):
    def lin(v, w_ref, b_ref):
        # bf16 x bf16 operands, f32 MXU accumulation; bias added in f32.
        return jnp.dot(v.astype(jnp.bfloat16), w_ref[...],
                       preferred_element_type=jnp.float32) + b_ref[...]

    x = x_ref[...]                                      # (TB, 512) bf16
    h = _lrelu(lin(x, w1_ref, b1_ref))                  # (TB, 160) f32
    h = _lrelu(lin(h, w2_ref, b2_ref))                  # (TB, 160)
    h = _lrelu(lin(h, w3_ref, b3_ref))                  # (TB, 80)
    h = _lrelu(lin(h, w4_ref, b4_ref))                  # (TB, 40)
    t = _lrelu(lin(h, wh1_ref, bh1_ref))                # (TB, 60)  three heads fused
    out_ref[...] = _sigmoid(lin(t, wh2_ref, bh2_ref))   # (TB, 3)


def _pick_tb(B, tb=None, *, target_steps=4, min_tb=512, max_tb=2048):
    """Batch tile: multiple of 16 (bf16 sublane packing), >=2-4 grid steps for
    mid/large batches, capped at 2048 (<< v7x's 64 MiB VMEM), never larger than
    the 16-rounded batch."""
    b16 = _round_up(max(B, 1), 16)
    if tb is not None:
        return min(_round_up(tb, 16), b16)
    t = _round_up(pl.cdiv(max(B, 1), target_steps), 16)
    t = max(min_tb, min(t, max_tb))
    return min(t, b16)


def run_mlp(feat, params, *, tb):
    """feat: (B16, FEAT_PAD) bf16, batch already padded to a multiple of 16.
    Returns (B16, 3) f32.  Last grid tile may be ragged (Pallas masks writes)."""
    B16 = feat.shape[0]
    TB = tb
    grid = (pl.cdiv(B16, TB),)

    feat_spec = pl.BlockSpec((TB, FEAT_PAD), lambda i: (i, 0))
    # Constant block index -> weights/biases stay VMEM-resident across the grid.
    # (pipeline_mode=pl.Buffered(1) would drop their second buffer; left out as a
    #  tiny, optional VMEM saving.)
    param_specs = [pl.BlockSpec(p.shape, lambda i: (0, 0)) for p in params]
    out_spec = pl.BlockSpec((TB, 3), lambda i: (i, 0))

    return pl.pallas_call(
        mlp_kernel,
        out_shape=jax.ShapeDtypeStruct((B16, 3), jnp.float32),
        grid=grid,
        in_specs=[feat_spec] + param_specs,
        out_specs=out_spec,
        compiler_params=pltpu.CompilerParams(
            dimension_semantics=("parallel",),      # megacore-shard batch on v7x
            vmem_limit_bytes=48 * 1024 * 1024,      # headroom; safe on v7x's 64 MiB
        ),
    )(feat, *params)


# ---------------------------------------------------------------------------
# JAX glue: FFT feature extraction (mirrors FFT_MLP.fft_calc, count_harmonic=8)
# ---------------------------------------------------------------------------
def fft_features(x, batch_pad=0, dtype=jnp.bfloat16):
    # TODO(synk): rfft/angle (complex FFT + atan2) have no clean Pallas TPU
    # equivalent; feature extraction stays in plain JAX glue.
    B = x.shape[0]
    # PyTorch: x.reshape(B, x.size(2), x.size(1))  -- a reshape, NOT a transpose.
    x3 = jnp.reshape(x, (B, CHANNELS, FRAME))
    prev = jnp.fft.rfft(x3[:, :, :32])[:, :, :9]
    cur = jnp.fft.rfft(x3[:, :, 32:])[:, :, :9]
    amp_prev = jnp.abs(prev)
    amp_cur = jnp.abs(cur)
    # NOTE: deliberately faithful to the PyTorch quirk -- fft_phase_previous is
    # computed from the *current* window's FFT in the reference module. Do NOT
    # "fix" this to jnp.angle(prev).
    ph_prev = jnp.angle(cur)
    ph_cur = jnp.angle(cur)
    feat = jnp.concatenate([amp_prev, ph_prev, amp_cur, ph_cur], axis=-1)  # (B,14,36)
    feat = jnp.reshape(feat, (B, FEAT_DIM)).astype(dtype)                  # (B,504)
    # Single pad covers lane alignment (504 -> 512) AND batch rounding, so no
    # second full-HBM-pass pad is materialized in the wrapper.
    return jnp.pad(feat, ((0, batch_pad), (0, FEAT_PAD - FEAT_DIM)))


# ---------------------------------------------------------------------------
# Deterministic parameter construction (PyTorch Linear: y = x @ W.T + b)
# ---------------------------------------------------------------------------
def init_params(key):
    def linear(key, fan_in, fan_out):
        k1, k2 = jax.random.split(key)
        bound = 1.0 / np.sqrt(fan_in)
        w = jax.random.uniform(k1, (fan_out, fan_in), jnp.float32, -bound, bound)
        b = jax.random.uniform(k2, (fan_out,), jnp.float32, -bound, bound)
        return w, b

    keys = jax.random.split(key, 10)
    # trunk
    w1, b1 = linear(keys[0], FEAT_DIM, 4 * HIDDEN)
    w2, b2 = linear(keys[1], 4 * HIDDEN, 4 * HIDDEN)
    w3, b3 = linear(keys[2], 4 * HIDDEN, 2 * HIDDEN)
    w4, b4 = linear(keys[3], 2 * HIDDEN, HIDDEN)
    # heads: opr_swch, abnorm_evnt, emerg_evnt
    ws1, bs1 = linear(keys[4], HIDDEN, HIDDEN // 2)
    ws2, bs2 = linear(keys[5], HIDDEN // 2, 1)
    wa1, ba1 = linear(keys[6], HIDDEN, HIDDEN // 2)
    wa2, ba2 = linear(keys[7], HIDDEN // 2, 1)
    we1, be1 = linear(keys[8], HIDDEN, HIDDEN // 2)
    we2, be2 = linear(keys[9], HIDDEN // 2, 1)

    # K-pad first-layer weight: (504, 160) -> (512, 160), extra rows are zero.
    w1t_pad = jnp.zeros((FEAT_PAD, 4 * HIDDEN), jnp.float32).at[:FEAT_DIM, :].set(w1.T)

    # Fuse the three heads: first layer -> (40, 60); second layer -> block-diag (60, 3)
    H2 = HIDDEN // 2
    wh1 = jnp.concatenate([ws1.T, wa1.T, we1.T], axis=1)          # (40, 60)
    bh1 = jnp.concatenate([bs1, ba1, be1])                        # (60,)
    wh2 = jnp.zeros((3 * H2, 3), jnp.float32)
    wh2 = wh2.at[0:H2, 0].set(ws2[0])
    wh2 = wh2.at[H2:2 * H2, 1].set(wa2[0])
    wh2 = wh2.at[2 * H2:3 * H2, 2].set(we2[0])                    # (60, 3)
    bh2 = jnp.stack([bs2[0], ba2[0], be2[0]])                     # (3,)

    bf16 = jnp.bfloat16
    # Weights stored/streamed as bf16 (native MXU path); biases kept f32.
    kernel_params = (
        w1t_pad.astype(bf16), b1.reshape(1, -1),
        w2.T.astype(bf16),    b2.reshape(1, -1),
        w3.T.astype(bf16),    b3.reshape(1, -1),
        w4.T.astype(bf16),    b4.reshape(1, -1),
        wh1.astype(bf16),     bh1.reshape(1, -1),
        wh2.astype(bf16),     bh2.reshape(1, -1),
    )
    raw = dict(w1=w1, b1=b1, w2=w2, b2=b2, w3=w3, b3=b3, w4=w4, b4=b4,
               ws1=ws1, bs1=bs1, ws2=ws2, bs2=bs2,
               wa1=wa1, ba1=ba1, wa2=wa2, ba2=ba2,
               we1=we1, be1=be1, we2=we2, be2=be2)
    return kernel_params, raw


# Pure-JAX f32 reference of the full forward (for a correctness sanity check)
def reference_forward(x, p):
    def lin(v, w, b):
        return v @ w.T + b

    def lrelu(v):
        return jnp.where(v >= 0, v, 0.05 * v)

    f = fft_features(x, 0, jnp.float32)[:, :FEAT_DIM]
    h = lrelu(lin(f, p["w1"], p["b1"]))
    h = lrelu(lin(h, p["w2"], p["b2"]))
    h = lrelu(lin(h, p["w3"], p["b3"]))
    h = lrelu(lin(h, p["w4"], p["b4"]))

    def head(wA, bA, wB, bB):
        t = lrelu(lin(h, wA, bA))
        return jax.nn.sigmoid(lin(t, wB, bB))

    o1 = head(p["ws1"], p["bs1"], p["ws2"], p["bs2"])
    o2 = head(p["wa1"], p["ba1"], p["wa2"], p["ba2"])
    o3 = head(p["we1"], p["be1"], p["we2"], p["be2"])
    return jnp.concatenate([o1, o2, o3], axis=1)


def fft_mlp_forward(x, kernel_params, *, tb=None):
    B = x.shape[0]
    TB = _pick_tb(B, tb)
    B16 = _round_up(B, 16)
    feat = fft_features(x, batch_pad=B16 - B)        # (B16, 512) bf16
    out = run_mlp(feat, kernel_params, tb=TB)        # (B16, 3) f32
    return out[:B]


if __name__ == "__main__":
    key = jax.random.PRNGKey(0)
    k_x, k_p, k_x2 = jax.random.split(key, 3)

    kernel_params, raw_params = init_params(k_p)

    # Small-shape check (B=2): single grid step, padded-to-16 batch tile.
    B = 2
    x = jax.random.normal(k_x, (B, FRAME, CHANNELS), jnp.float32)  # (2, 64, 14)
    out = jax.block_until_ready(fft_mlp_forward(x, kernel_params))
    ref = jax.block_until_ready(reference_forward(x, raw_params))
    assert out.shape == (B, 3), out.shape
    np.testing.assert_allclose(np.asarray(out), np.asarray(ref), rtol=5e-2, atol=2e-2)

    # Multi-tile check: exercises the batch grid (3 steps), resident weights and
    # the ragged last tile (304 rows / TB=128 -> masked writes on the tail).
    B2 = 300
    x2 = jax.random.normal(k_x2, (B2, FRAME, CHANNELS), jnp.float32)
    out2 = jax.block_until_ready(fft_mlp_forward(x2, kernel_params, tb=128))
    ref2 = jax.block_until_ready(reference_forward(x2, raw_params))
    assert out2.shape == (B2, 3), out2.shape
    np.testing.assert_allclose(np.asarray(out2), np.asarray(ref2), rtol=5e-2, atol=2e-2)

    print("KERNEL_OK")
</pallas_src>

<mosaic_0001>
module attributes {stable_mosaic.version = 11 : i64} {
  func.func @mlp_kernel(%arg0: i32, %arg1: memref<16x512xbf16, #tpu.memory_space<vmem>>, %arg2: memref<512x160xbf16, #tpu.memory_space<vmem>>, %arg3: memref<1x160xf32, #tpu.memory_space<vmem>>, %arg4: memref<160x160xbf16, #tpu.memory_space<vmem>>, %arg5: memref<1x160xf32, #tpu.memory_space<vmem>>, %arg6: memref<160x80xbf16, #tpu.memory_space<vmem>>, %arg7: memref<1x80xf32, #tpu.memory_space<vmem>>, %arg8: memref<80x40xbf16, #tpu.memory_space<vmem>>, %arg9: memref<1x40xf32, #tpu.memory_space<vmem>>, %arg10: memref<40x60xbf16, #tpu.memory_space<vmem>>, %arg11: memref<1x60xf32, #tpu.memory_space<vmem>>, %arg12: memref<60x3xbf16, #tpu.memory_space<vmem>>, %arg13: memref<1x3xf32, #tpu.memory_space<vmem>>, %arg14: memref<16x3xf32, #tpu.memory_space<vmem>>) attributes {dimension_semantics = [#tpu.dimension_semantics<parallel>], iteration_bounds = array<i64: 1>, scalar_prefetch = 0 : i64, scratch_operands = 0 : i64, tpu.core_type = #tpu.core_type<tc>, window_params = [{transform_indices = @transform_0, window_bounds = array<i64: 16, 512>}, {pipeline_mode = #tpu.pipeline_mode<synchronous>, transform_indices = @transform_1, window_bounds = array<i64: 512, 160>}, {pipeline_mode = #tpu.pipeline_mode<synchronous>, transform_indices = @transform_2, window_bounds = array<i64: 1, 160>}, {pipeline_mode = #tpu.pipeline_mode<synchronous>, transform_indices = @transform_3, window_bounds = array<i64: 160, 160>}, {pipeline_mode = #tpu.pipeline_mode<synchronous>, transform_indices = @transform_4, window_bounds = array<i64: 1, 160>}, {pipeline_mode = #tpu.pipeline_mode<synchronous>, transform_indices = @transform_5, window_bounds = array<i64: 160, 80>}, {pipeline_mode = #tpu.pipeline_mode<synchronous>, transform_indices = @transform_6, window_bounds = array<i64: 1, 80>}, {pipeline_mode = #tpu.pipeline_mode<synchronous>, transform_indices = @transform_7, window_bounds = array<i64: 80, 40>}, {pipeline_mode = #tpu.pipeline_mode<synchronous>, transform_indices = @transform_8, window_bounds = array<i64: 1, 40>}, {pipeline_mode = #tpu.pipeline_mode<synchronous>, transform_indices = @transform_9, window_bounds = array<i64: 40, 60>}, {pipeline_mode = #tpu.pipeline_mode<synchronous>, transform_indices = @transform_10, window_bounds = array<i64: 1, 60>}, {pipeline_mode = #tpu.pipeline_mode<synchronous>, transform_indices = @transform_11, window_bounds = array<i64: 60, 3>}, {pipeline_mode = #tpu.pipeline_mode<synchronous>, transform_indices = @transform_12, window_bounds = array<i64: 1, 3>}, {transform_indices = @transform_13, window_bounds = array<i64: 16, 3>}]} {
    %c0 = arith.constant 0 : index
    %c0_0 = arith.constant 0 : index
    %0 = vector.load %arg1[%c0, %c0_0] : memref<16x512xbf16, #tpu.memory_space<vmem>>, vector<16x512xbf16>
    %c0_1 = arith.constant 0 : index
    %c0_2 = arith.constant 0 : index
    %1 = vector.load %arg2[%c0_1, %c0_2] : memref<512x160xbf16, #tpu.memory_space<vmem>>, vector<512x160xbf16>
    %cst = arith.constant dense<0.000000e+00> : vector<16x160xf32>
    %2 = tpu.matmul %0, %1, %cst {dimension_numbers = #tpu.dot_dimension_numbers<[1], [0], [0], [1], [0, 0, 1, 1], [], []>} : vector<16x512xbf16>, vector<512x160xbf16>, vector<16x160xf32> -> vector<16x160xf32>
    %c0_3 = arith.constant 0 : index
    %c0_4 = arith.constant 0 : index
    %3 = vector.load %arg3[%c0_3, %c0_4] : memref<1x160xf32, #tpu.memory_space<vmem>>, vector<1x160xf32>
    %4 = vector.broadcast %3 : vector<1x160xf32> to vector<16x160xf32>
    %5 = arith.addf %2, %4 : vector<16x160xf32>
    %cst_5 = arith.constant 5.000000e-02 : f32
    %6 = vector.broadcast %cst_5 : f32 to vector<16x160xf32>
    %7 = arith.mulf %6, %5 : vector<16x160xf32>
    %8 = arith.maximumf %5, %7 : vector<16x160xf32>
    %9 = arith.truncf %8 : vector<16x160xf32> to vector<16x160xbf16>
    %c0_6 = arith.constant 0 : index
    %c0_7 = arith.constant 0 : index
    %10 = vector.load %arg4[%c0_6, %c0_7] : memref<160x160xbf16, #tpu.memory_space<vmem>>, vector<160x160xbf16>
    %cst_8 = arith.constant dense<0.000000e+00> : vector<16x160xf32>
    %11 = tpu.matmul %9, %10, %cst_8 {dimension_numbers = #tpu.dot_dimension_numbers<[1], [0], [0], [1], [0, 0, 1, 1], [], []>} : vector<16x160xbf16>, vector<160x160xbf16>, vector<16x160xf32> -> vector<16x160xf32>
    %c0_9 = arith.constant 0 : index
    %c0_10 = arith.constant 0 : index
    %12 = vector.load %arg5[%c0_9, %c0_10] : memref<1x160xf32, #tpu.memory_space<vmem>>, vector<1x160xf32>
    %13 = vector.broadcast %12 : vector<1x160xf32> to vector<16x160xf32>
    %14 = arith.addf %11, %13 : vector<16x160xf32>
    %cst_11 = arith.constant 5.000000e-02 : f32
    %15 = vector.broadcast %cst_11 : f32 to vector<16x160xf32>
    %16 = arith.mulf %15, %14 : vector<16x160xf32>
    %17 = arith.maximumf %14, %16 : vector<16x160xf32>
    %18 = arith.truncf %17 : vector<16x160xf32> to vector<16x160xbf16>
    %c0_12 = arith.constant 0 : index
    %c0_13 = arith.constant 0 : index
    %19 = vector.load %arg6[%c0_12, %c0_13] : memref<160x80xbf16, #tpu.memory_space<vmem>>, vector<160x80xbf16>
    %cst_14 = arith.constant dense<0.000000e+00> : vector<16x80xf32>
    %20 = tpu.matmul %18, %19, %cst_14 {dimension_numbers = #tpu.dot_dimension_numbers<[1], [0], [0], [1], [0, 0, 1, 1], [], []>} : vector<16x160xbf16>, vector<160x80xbf16>, vector<16x80xf32> -> vector<16x80xf32>
    %c0_15 = arith.constant 0 : index
    %c0_16 = arith.constant 0 : index
    %21 = vector.load %arg7[%c0_15, %c0_16] : memref<1x80xf32, #tpu.memory_space<vmem>>, vector<1x80xf32>
    %22 = vector.broadcast %21 : vector<1x80xf32> to vector<16x80xf32>
    %23 = arith.addf %20, %22 : vector<16x80xf32>
    %cst_17 = arith.constant 5.000000e-02 : f32
    %24 = vector.broadcast %cst_17 : f32 to vector<16x80xf32>
    %25 = arith.mulf %24, %23 : vector<16x80xf32>
    %26 = arith.maximumf %23, %25 : vector<16x80xf32>
    %27 = arith.truncf %26 : vector<16x80xf32> to vector<16x80xbf16>
    %c0_18 = arith.constant 0 : index
    %c0_19 = arith.constant 0 : index
    %28 = vector.load %arg8[%c0_18, %c0_19] : memref<80x40xbf16, #tpu.memory_space<vmem>>, vector<80x40xbf16>
    %cst_20 = arith.constant dense<0.000000e+00> : vector<16x40xf32>
    %29 = tpu.matmul %27, %28, %cst_20 {dimension_numbers = #tpu.dot_dimension_numbers<[1], [0], [0], [1], [0, 0, 1, 1], [], []>} : vector<16x80xbf16>, vector<80x40xbf16>, vector<16x40xf32> -> vector<16x40xf32>
    %c0_21 = arith.constant 0 : index
    %c0_22 = arith.constant 0 : index
    %30 = vector.load %arg9[%c0_21, %c0_22] : memref<1x40xf32, #tpu.memory_space<vmem>>, vector<1x40xf32>
    %31 = vector.broadcast %30 : vector<1x40xf32> to vector<16x40xf32>
    %32 = arith.addf %29, %31 : vector<16x40xf32>
    %cst_23 = arith.constant 5.000000e-02 : f32
    %33 = vector.broadcast %cst_23 : f32 to vector<16x40xf32>
    %34 = arith.mulf %33, %32 : vector<16x40xf32>
    %35 = arith.maximumf %32, %34 : vector<16x40xf32>
    %36 = arith.truncf %35 : vector<16x40xf32> to vector<16x40xbf16>
    %c0_24 = arith.constant 0 : index
    %c0_25 = arith.constant 0 : index
    %37 = vector.load %arg10[%c0_24, %c0_25] : memref<40x60xbf16, #tpu.memory_space<vmem>>, vector<40x60xbf16>
    %cst_26 = arith.constant dense<0.000000e+00> : vector<16x60xf32>
    %38 = tpu.matmul %36, %37, %cst_26 {dimension_numbers = #tpu.dot_dimension_numbers<[1], [0], [0], [1], [0, 0, 1, 1], [], []>} : vector<16x40xbf16>, vector<40x60xbf16>, vector<16x60xf32> -> vector<16x60xf32>
    %c0_27 = arith.constant 0 : index
    %c0_28 = arith.constant 0 : index
    %39 = vector.load %arg11[%c0_27, %c0_28] : memref<1x60xf32, #tpu.memory_space<vmem>>, vector<1x60xf32>
    %40 = vector.broadcast %39 : vector<1x60xf32> to vector<16x60xf32>
    %41 = arith.addf %38, %40 : vector<16x60xf32>
    %cst_29 = arith.constant 5.000000e-02 : f32
    %42 = vector.broadcast %cst_29 : f32 to vector<16x60xf32>
    %43 = arith.mulf %42, %41 : vector<16x60xf32>
    %44 = arith.maximumf %41, %43 : vector<16x60xf32>
    %45 = arith.truncf %44 : vector<16x60xf32> to vector<16x60xbf16>
    %c0_30 = arith.constant 0 : index
    %c0_31 = arith.constant 0 : index
    %46 = vector.load %arg12[%c0_30, %c0_31] : memref<60x3xbf16, #tpu.memory_space<vmem>>, vector<60x3xbf16>
    %cst_32 = arith.constant dense<0.000000e+00> : vector<16x3xf32>
    %47 = tpu.matmul %45, %46, %cst_32 {dimension_numbers = #tpu.dot_dimension_numbers<[1], [0], [0], [1], [0, 0, 1, 1], [], []>} : vector<16x60xbf16>, vector<60x3xbf16>, vector<16x3xf32> -> vector<16x3xf32>
    %c0_33 = arith.constant 0 : index
    %c0_34 = arith.constant 0 : index
    %48 = vector.load %arg13[%c0_33, %c0_34] : memref<1x3xf32, #tpu.memory_space<vmem>>, vector<1x3xf32>
    %49 = vector.broadcast %48 : vector<1x3xf32> to vector<16x3xf32>
    %50 = arith.addf %47, %49 : vector<16x3xf32>
    %51 = math.absf %50 : vector<16x3xf32>
    %cst_35 = arith.constant 0.000000e+00 : f32
    %52 = vector.broadcast %cst_35 : f32 to vector<16x3xf32>
    %53 = arith.subf %52, %51 : vector<16x3xf32>
    %54 = math.exp %53 : vector<16x3xf32>
    %cst_36 = arith.constant 1.000000e+00 : f32
    %55 = vector.broadcast %cst_36 : f32 to vector<16x3xf32>
    %56 = arith.addf %55, %54 : vector<16x3xf32>
    %57 = tpu.reciprocal %56 {approx = true} : vector<16x3xf32> -> vector<16x3xf32>
    %cst_37 = arith.constant 0.000000e+00 : f32
    %58 = vector.broadcast %cst_37 : f32 to vector<16x3xf32>
    %59 = arith.cmpf oge, %50, %58 : vector<16x3xf32>
    %60 = arith.mulf %54, %57 : vector<16x3xf32>
    %61 = arith.select %59, %57, %60 : vector<16x3xi1>, vector<16x3xf32>
    %c0_38 = arith.constant 0 : index
    %c0_39 = arith.constant 0 : index
    %62 = vector.load %arg14[%c0_38, %c0_39] : memref<16x3xf32, #tpu.memory_space<vmem>>, vector<16x3xf32>
    tpu.vector_store %arg14[%c0_38, %c0_39], %61 {strides = array<i32>} : memref<16x3xf32, #tpu.memory_space<vmem>>, vector<16x3xf32>,
    return
  }
  func.func @transform_0(%arg0: i32) -> (i32, i32) {
    %c0_i32 = arith.constant 0 : i32
    %c0_i32_0 = arith.constant 0 : i32
    return %arg0, %c0_i32 : i32, i32
  }
  func.func @transform_1(%arg0: i32) -> (i32, i32) {
    %c0_i32 = arith.constant 0 : i32
    %c0_i32_0 = arith.constant 0 : i32
    %c0_i32_1 = arith.constant 0 : i32
    return %c0_i32, %c0_i32_0 : i32, i32
  }
  func.func @transform_2(%arg0: i32) -> (i32, i32) {
    %c0_i32 = arith.constant 0 : i32
    %c0_i32_0 = arith.constant 0 : i32
    %c0_i32_1 = arith.constant 0 : i32
    return %c0_i32, %c0_i32_0 : i32, i32
  }
  func.func @transform_3(%arg0: i32) -> (i32, i32) {
    %c0_i32 = arith.constant 0 : i32
    %c0_i32_0 = arith.constant 0 : i32
    %c0_i32_1 = arith.constant 0 : i32
    return %c0_i32, %c0_i32_0 : i32, i32
  }
  func.func @transform_4(%arg0: i32) -> (i32, i32) {
    %c0_i32 = arith.constant 0 : i32
    %c0_i32_0 = arith.constant 0 : i32
    %c0_i32_1 = arith.constant 0 : i32
    return %c0_i32, %c0_i32_0 : i32, i32
  }
  func.func @transform_5(%arg0: i32) -> (i32, i32) {
    %c0_i32 = arith.constant 0 : i32
    %c0_i32_0 = arith.constant 0 : i32
    %c0_i32_1 = arith.constant 0 : i32
    return %c0_i32, %c0_i32_0 : i32, i32
  }
  func.func @transform_6(%arg0: i32) -> (i32, i32) {
    %c0_i32 = arith.constant 0 : i32
    %c0_i32_0 = arith.constant 0 : i32
    %c0_i32_1 = arith.constant 0 : i32
    return %c0_i32, %c0_i32_0 : i32, i32
  }
  func.func @transform_7(%arg0: i32) -> (i32, i32) {
    %c0_i32 = arith.constant 0 : i32
    %c0_i32_0 = arith.constant 0 : i32
    %c0_i32_1 = arith.constant 0 : i32
    return %c0_i32, %c0_i32_0 : i32, i32
  }
  func.func @transform_8(%arg0: i32) -> (i32, i32) {
    %c0_i32 = arith.constant 0 : i32
    %c0_i32_0 = arith.constant 0 : i32
    %c0_i32_1 = arith.constant 0 : i32
    return %c0_i32, %c0_i32_0 : i32, i32
  }
  func.func @transform_9(%arg0: i32) -> (i32, i32) {
    %c0_i32 = arith.constant 0 : i32
    %c0_i32_0 = arith.constant 0 : i32
    %c0_i32_1 = arith.constant 0 : i32
    return %c0_i32, %c0_i32_0 : i32, i32
  }
  func.func @transform_10(%arg0: i32) -> (i32, i32) {
    %c0_i32 = arith.constant 0 : i32
    %c0_i32_0 = arith.constant 0 : i32
    %c0_i32_1 = arith.constant 0 : i32
    return %c0_i32, %c0_i32_0 : i32, i32
  }
  func.func @transform_11(%arg0: i32) -> (i32, i32) {
    %c0_i32 = arith.constant 0 : i32
    %c0_i32_0 = arith.constant 0 : i32
    %c0_i32_1 = arith.constant 0 : i32
    return %c0_i32, %c0_i32_0 : i32, i32
  }
  func.func @transform_12(%arg0: i32) -> (i32, i32) {
    %c0_i32 = arith.constant 0 : i32
    %c0_i32_0 = arith.constant 0 : i32
    %c0_i32_1 = arith.constant 0 : i32
    return %c0_i32, %c0_i32_0 : i32, i32
  }
  func.func @transform_13(%arg0: i32) -> (i32, i32) {
    %c0_i32 = arith.constant 0 : i32
    %c0_i32_0 = arith.constant 0 : i32
    return %arg0, %c0_i32 : i32, i32
  }
}

</mosaic_0001>

<llo_original>
// kernel: tpu_custom_call.1
$region0: #{tpu_custom_call.1}
  #allocation0 [shape = 'u32[]', space=smem, size = 0x4, offset = 0x4, fixed_abs, tag = 'smem constant byte address 0x4 - core index']
  #allocation1 [shape = 'u32[72,128]{1,0:T(1,128)}', space=vmem, size = 0x9000, scoped, tag = 'internal scratch']
  %s0 = inlined_call_operand.vmem [shape: bf16[16,512], index: 0, kind: input, shape index: {}]
  %s1 = inlined_call_operand.vmem [shape: bf16[512,160], index: 1, kind: input, shape index: {}]
  %s2 = inlined_call_operand.vmem [shape: f32[1,160], index: 2, kind: input, shape index: {}]
  %s3 = inlined_call_operand.vmem [shape: bf16[160,160], index: 3, kind: input, shape index: {}]
  %s4 = inlined_call_operand.vmem [shape: f32[1,160], index: 4, kind: input, shape index: {}]
  %s5 = inlined_call_operand.vmem [shape: bf16[160,80], index: 5, kind: input, shape index: {}]
  %s6 = inlined_call_operand.vmem [shape: f32[1,80], index: 6, kind: input, shape index: {}]
  %s7 = inlined_call_operand.vmem [shape: bf16[80,40], index: 7, kind: input, shape index: {}]
  %s8 = inlined_call_operand.vmem [shape: f32[1,40], index: 8, kind: input, shape index: {}]
  %s9 = inlined_call_operand.vmem [shape: bf16[40,60], index: 9, kind: input, shape index: {}]
  %s10 = inlined_call_operand.vmem [shape: f32[1,60], index: 10, kind: input, shape index: {}]
  %s11 = inlined_call_operand.vmem [shape: bf16[60,3], index: 11, kind: input, shape index: {}]
  %s12 = inlined_call_operand.vmem [shape: f32[1,3], index: 12, kind: input, shape index: {}]
  %s13 = inlined_call_operand.vmem [shape: f32[16,3], index: 13, kind: output, shape index: {}]
  %s14 = sld [smem:[#allocation0]]
  $region62: #{tpu_custom_call.1} parent=0
    _
  %s16 = ssub.s32 1, %s14
  %s17 = scalar_select 0, %s16, %s14
  // Predicated region
  $region2: #{tpu_custom_call.1} parent=0 // pred_check
    _
  $region3: #{tpu_custom_call.1} parent=0 // pred_check_branch
    %19 = sbr.rel (0) target = $region5
  $region4: #{tpu_custom_call.1} parent=0 // pred_region
    _
  $region5: #{tpu_custom_call.1} parent=0 // pred_fallthru
    _
  // Predicated region
  $region6: #{tpu_custom_call.1} parent=0 // pred_check
    _
  $region7: #{tpu_custom_call.1} parent=0 // pred_check_branch
    %21 = sbr.rel (0) target = $region9
  $region8: #{tpu_custom_call.1} parent=0 // pred_region
    _
  $region9: #{tpu_custom_call.1} parent=0 // pred_fallthru
    _
  // Predicated region
  $region10: #{tpu_custom_call.1} parent=0 // pred_check
    _
  $region11: #{tpu_custom_call.1} parent=0 // pred_check_branch
    %23 = sbr.rel (0) target = $region13
  $region12: #{tpu_custom_call.1} parent=0 // pred_region
    _
  $region13: #{tpu_custom_call.1} parent=0 // pred_fallthru
    _
  // Predicated region
  $region14: #{tpu_custom_call.1} parent=0 // pred_check
    _
  $region15: #{tpu_custom_call.1} parent=0 // pred_check_branch
    %25 = sbr.rel (0) target = $region17
  $region16: #{tpu_custom_call.1} parent=0 // pred_region
    _
  $region17: #{tpu_custom_call.1} parent=0 // pred_fallthru
    _
  // Predicated region
  $region18: #{tpu_custom_call.1} parent=0 // pred_check
    _
  $region19: #{tpu_custom_call.1} parent=0 // pred_check_branch
    %27 = sbr.rel (0) target = $region21
  $region20: #{tpu_custom_call.1} parent=0 // pred_region
    _
  $region21: #{tpu_custom_call.1} parent=0 // pred_fallthru
    _
  // Predicated region
  $region22: #{tpu_custom_call.1} parent=0 // pred_check
    _
  $region23: #{tpu_custom_call.1} parent=0 // pred_check_branch
    %29 = sbr.rel (0) target = $region25
  $region24: #{tpu_custom_call.1} parent=0 // pred_region
    _
  $region25: #{tpu_custom_call.1} parent=0 // pred_fallthru
    _
  // Predicated region
  $region26: #{tpu_custom_call.1} parent=0 // pred_check
    _
  $region27: #{tpu_custom_call.1} parent=0 // pred_check_branch
    %31 = sbr.rel (0) target = $region29
  $region28: #{tpu_custom_call.1} parent=0 // pred_region
    _
  $region29: #{tpu_custom_call.1} parent=0 // pred_fallthru
    _
  // Predicated region
  $region30: #{tpu_custom_call.1} parent=0 // pred_check
    _
  $region31: #{tpu_custom_call.1} parent=0 // pred_check_branch
    %33 = sbr.rel (0) target = $region33
  $region32: #{tpu_custom_call.1} parent=0 // pred_region
    _
  $region33: #{tpu_custom_call.1} parent=0 // pred_fallthru
    _
  // Predicated region
  $region34: #{tpu_custom_call.1} parent=0 // pred_check
    _
  $region35: #{tpu_custom_call.1} parent=0 // pred_check_branch
    %35 = sbr.rel (0) target = $region37
  $region36: #{tpu_custom_call.1} parent=0 // pred_region
    _
  $region37: #{tpu_custom_call.1} parent=0 // pred_fallthru
    _
  // Predicated region
  $region38: #{tpu_custom_call.1} parent=0 // pred_check
    _
  $region39: #{tpu_custom_call.1} parent=0 // pred_check_branch
    %37 = sbr.rel (0) target = $region41
  $region40: #{tpu_custom_call.1} parent=0 // pred_region
    _
  $region41: #{tpu_custom_call.1} parent=0 // pred_fallthru
    _
  // Predicated region
  $region42: #{tpu_custom_call.1} parent=0 // pred_check
    _
  $region43: #{tpu_custom_call.1} parent=0 // pred_check_branch
    %39 = sbr.rel (0) target = $region45
  $region44: #{tpu_custom_call.1} parent=0 // pred_region
    _
  $region45: #{tpu_custom_call.1} parent=0 // pred_fallthru
    _
  // Predicated region
  $region46: #{tpu_custom_call.1} parent=0 // pred_check
    _
  $region47: #{tpu_custom_call.1} parent=0 // pred_check_branch
    %41 = sbr.rel (0) target = $region49
  $region48: #{tpu_custom_call.1} parent=0 // pred_region
    _
  $region49: #{tpu_custom_call.1} parent=0 // pred_fallthru
    _
  // Predicated region
  $region50: #{tpu_custom_call.1} parent=0 // pred_check
    _
  $region51: #{tpu_custom_call.1} parent=0 // pred_check_branch
    %43 = sbr.rel (0) target = $region53
  $region52: #{tpu_custom_call.1} parent=0 // pred_region
    _
  $region53: #{tpu_custom_call.1} parent=0 // pred_fallthru
    _
  %v45 = vld [vmem:[%s0] sm:$0xff]
  %v46 = vld [vmem:[%s0 + $0x8] sm:$0xff]
  %v47 = vld [vmem:[%s0 + $0x10] sm:$0xff]
  %v48 = vld [vmem:[%s0 + $0x18] sm:$0xff]
  %v49 = vld [vmem:[%s1] sm:$0xff]
  %v50 = vld [vmem:[%s1 + $0x8] sm:$0xff]
  %v51 = vld [vmem:[%s1 + $0x10] sm:$0xff]
  %v52 = vld [vmem:[%s1 + $0x18] sm:$0xff]
  %v53 = vld [vmem:[%s1 + $0x20] sm:$0xff]
  %v54 = vld [vmem:[%s1 + $0x28] sm:$0xff]
  %v55 = vld [vmem:[%s1 + $0x30] sm:$0xff]
  %v56 = vld [vmem:[%s1 + $0x38] sm:$0xff]
  %v57 = vld [vmem:[%s1 + $0x40] sm:$0xff]
  %v58 = vld [vmem:[%s1 + $0x48] sm:$0xff]
  %v59 = vld [vmem:[%s1 + $0x50] sm:$0xff]
  %v60 = vld [vmem:[%s1 + $0x58] sm:$0xff]
  %v61 = vld [vmem:[%s1 + $0x60] sm:$0xff]
  %v62 = vld [vmem:[%s1 + $0x68] sm:$0xff]
  %v63 = vld [vmem:[%s1 + $0x70] sm:$0xff]
  %v64 = vld [vmem:[%s1 + $0x78] sm:$0xff]
  %v65 = vld [vmem:[%s1 + $0x80] sm:$0xff]
  %v66 = vld [vmem:[%s1 + $0x88] sm:$0xff]
  %v67 = vld [vmem:[%s1 + $0x90] sm:$0xff]
  %v68 = vld [vmem:[%s1 + $0x98] sm:$0xff]
  %v69 = vld [vmem:[%s1 + $0xa0] sm:$0xff]
  %v70 = vld [vmem:[%s1 + $0xa8] sm:$0xff]
  %v71 = vld [vmem:[%s1 + $0xb0] sm:$0xff]
  %v72 = vld [vmem:[%s1 + $0xb8] sm:$0xff]
  %v73 = vld [vmem:[%s1 + $0xc0] sm:$0xff]
  %v74 = vld [vmem:[%s1 + $0xc8] sm:$0xff]
  %v75 = vld [vmem:[%s1 + $0xd0] sm:$0xff]
  %v76 = vld [vmem:[%s1 + $0xd8] sm:$0xff]
  %v77 = vld [vmem:[%s1 + $0xe0] sm:$0xff]
  %v78 = vld [vmem:[%s1 + $0xe8] sm:$0xff]
  %v79 = vld [vmem:[%s1 + $0xf0] sm:$0xff]
  %v80 = vld [vmem:[%s1 + $0xf8] sm:$0xff]
  %v81 = vld [vmem:[%s1 + $0x100] sm:$0xff]
  %v82 = vld [vmem:[%s1 + $0x108] sm:$0xff]
  %v83 = vld [vmem:[%s1 + $0x110] sm:$0xff]
  %v84 = vld [vmem:[%s1 + $0x118] sm:$0xff]
  %v85 = vld [vmem:[%s1 + $0x120] sm:$0xff]
  %v86 = vld [vmem:[%s1 + $0x128] sm:$0xff]
  %v87 = vld [vmem:[%s1 + $0x130] sm:$0xff]
  %v88 = vld [vmem:[%s1 + $0x138] sm:$0xff]
  %v89 = vld [vmem:[%s1 + $0x140] sm:$0xff]
  %v90 = vld [vmem:[%s1 + $0x148] sm:$0xff]
  %v91 = vld [vmem:[%s1 + $0x150] sm:$0xff]
  %v92 = vld [vmem:[%s1 + $0x158] sm:$0xff]
  %v93 = vld [vmem:[%s1 + $0x160] sm:$0xff]
  %v94 = vld [vmem:[%s1 + $0x168] sm:$0xff]
  %v95 = vld [vmem:[%s1 + $0x170] sm:$0xff]
  %v96 = vld [vmem:[%s1 + $0x178] sm:$0xff]
  %v97 = vld [vmem:[%s1 + $0x180] sm:$0xff]
  %v98 = vld [vmem:[%s1 + $0x188] sm:$0xff]
  %v99 = vld [vmem:[%s1 + $0x190] sm:$0xff]
  %v100 = vld [vmem:[%s1 + $0x198] sm:$0xff]
  %v101 = vld [vmem:[%s1 + $0x1a0] sm:$0xff]
  %v102 = vld [vmem:[%s1 + $0x1a8] sm:$0xff]
  %v103 = vld [vmem:[%s1 + $0x1b0] sm:$0xff]
  %v104 = vld [vmem:[%s1 + $0x1b8] sm:$0xff]
  %v105 = vld [vmem:[%s1 + $0x1c0] sm:$0xff]
  %v106 = vld [vmem:[%s1 + $0x1c8] sm:$0xff]
  %v107 = vld [vmem:[%s1 + $0x1d0] sm:$0xff]
  %v108 = vld [vmem:[%s1 + $0x1d8] sm:$0xff]
  %v109 = vld [vmem:[%s1 + $0x1e0] sm:$0xff]
  %v110 = vld [vmem:[%s1 + $0x1e8] sm:$0xff]
  %v111 = vld [vmem:[%s1 + $0x1f0] sm:$0xff]
  %v112 = vld [vmem:[%s1 + $0x1f8] sm:$0xff]
  %v113 = vld [vmem:[%s2] sm:$0x3]
  %v115 = vperm.slane %v113, 0
  %v116 = vperm.slane %v113, 1
  %v123 = vunpack.c.l.b16 %v45
  %v124 = vunpack.c.h.b16 %v45
  %v125 = vunpack.c.l.b16 %v46
  %v126 = vunpack.c.h.b16 %v46
  %v127 = vunpack.c.l.b16 %v47
  %v128 = vunpack.c.h.b16 %v47
  %v129 = vunpack.c.l.b16 %v48
  %v130 = vunpack.c.h.b16 %v48
  %v131 = vpack.c.b16 %v127, %v123
  %v132 = vpack.c.b16 %v128, %v124
  %v133 = vpack.c.b16 %v129, %v125
  %v134 = vpack.c.b16 %v130, %v126
  %v203 = vunpack.c.l.b16 %v49
  %v204 = vunpack.c.h.b16 %v49
  %v205 = vunpack.c.l.b16 %v50
  %v206 = vunpack.c.h.b16 %v50
  %v207 = vunpack.c.l.b16 %v51
  %v208 = vunpack.c.h.b16 %v51
  %v209 = vunpack.c.l.b16 %v52
  %v210 = vunpack.c.h.b16 %v52
  %v211 = vunpack.c.l.b16 %v53
  %v212 = vunpack.c.h.b16 %v53
  %v213 = vunpack.c.l.b16 %v54
  %v214 = vunpack.c.h.b16 %v54
  %v215 = vunpack.c.l.b16 %v55
  %v216 = vunpack.c.h.b16 %v55
  %v217 = vunpack.c.l.b16 %v56
  %v218 = vunpack.c.h.b16 %v56
  %v219 = vunpack.c.l.b16 %v57
  %v220 = vunpack.c.h.b16 %v57
  %v221 = vunpack.c.l.b16 %v58
  %v222 = vunpack.c.h.b16 %v58
  %v223 = vunpack.c.l.b16 %v59
  %v224 = vunpack.c.h.b16 %v59
  %v225 = vunpack.c.l.b16 %v60
  %v226 = vunpack.c.h.b16 %v60
  %v227 = vunpack.c.l.b16 %v61
  %v228 = vunpack.c.h.b16 %v61
  %v229 = vunpack.c.l.b16 %v62
  %v230 = vunpack.c.h.b16 %v62
  %v231 = vunpack.c.l.b16 %v63
  %v232 = vunpack.c.h.b16 %v63
  %v233 = vunpack.c.l.b16 %v64
  %v234 = vunpack.c.h.b16 %v64
  %v235 = vunpack.c.l.b16 %v65
  %v236 = vunpack.c.h.b16 %v65
  %v237 = vunpack.c.l.b16 %v66
  %v238 = vunpack.c.h.b16 %v66
  %v239 = vunpack.c.l.b16 %v67
  %v240 = vunpack.c.h.b16 %v67
  %v241 = vunpack.c.l.b16 %v68
  %v242 = vunpack.c.h.b16 %v68
  %v243 = vunpack.c.l.b16 %v69
  %v244 = vunpack.c.h.b16 %v69
  %v245 = vunpack.c.l.b16 %v70
  %v246 = vunpack.c.h.b16 %v70
  %v247 = vunpack.c.l.b16 %v71
  %v248 = vunpack.c.h.b16 %v71
  %v249 = vunpack.c.l.b16 %v72
  %v250 = vunpack.c.h.b16 %v72
  %v251 = vunpack.c.l.b16 %v73
  %v252 = vunpack.c.h.b16 %v73
  %v253 = vunpack.c.l.b16 %v74
  %v254 = vunpack.c.h.b16 %v74
  %v255 = vunpack.c.l.b16 %v75
  %v256 = vunpack.c.h.b16 %v75
  %v257 = vunpack.c.l.b16 %v76
  %v258 = vunpack.c.h.b16 %v76
  %v259 = vunpack.c.l.b16 %v77
  %v260 = vunpack.c.h.b16 %v77
  %v261 = vunpack.c.l.b16 %v78
  %v262 = vunpack.c.h.b16 %v78
  %v263 = vunpack.c.l.b16 %v79
  %v264 = vunpack.c.h.b16 %v79
  %v265 = vunpack.c.l.b16 %v80
  %v266 = vunpack.c.h.b16 %v80
  %v267 = vunpack.c.l.b16 %v81
  %v268 = vunpack.c.h.b16 %v81
  %v269 = vunpack.c.l.b16 %v82
  %v270 = vunpack.c.h.b16 %v82
  %v271 = vunpack.c.l.b16 %v83
  %v272 = vunpack.c.h.b16 %v83
  %v273 = vunpack.c.l.b16 %v84
  %v274 = vunpack.c.h.b16 %v84
  %v275 = vunpack.c.l.b16 %v85
  %v276 = vunpack.c.h.b16 %v85
  %v277 = vunpack.c.l.b16 %v86
  %v278 = vunpack.c.h.b16 %v86
  %v279 = vunpack.c.l.b16 %v87
  %v280 = vunpack.c.h.b16 %v87
  %v281 = vunpack.c.l.b16 %v88
  %v282 = vunpack.c.h.b16 %v88
  %v283 = vunpack.c.l.b16 %v89
  %v284 = vunpack.c.h.b16 %v89
  %v285 = vunpack.c.l.b16 %v90
  %v286 = vunpack.c.h.b16 %v90
  %v287 = vunpack.c.l.b16 %v91
  %v288 = vunpack.c.h.b16 %v91
  %v289 = vunpack.c.l.b16 %v92
  %v290 = vunpack.c.h.b16 %v92
  %v291 = vunpack.c.l.b16 %v93
  %v292 = vunpack.c.h.b16 %v93
  %v293 = vunpack.c.l.b16 %v94
  %v294 = vunpack.c.h.b16 %v94
  %v295 = vunpack.c.l.b16 %v95
  %v296 = vunpack.c.h.b16 %v95
  %v297 = vunpack.c.l.b16 %v96
  %v298 = vunpack.c.h.b16 %v96
  %v299 = vunpack.c.l.b16 %v97
  %v300 = vunpack.c.h.b16 %v97
  %v301 = vunpack.c.l.b16 %v98
  %v302 = vunpack.c.h.b16 %v98
  %v303 = vunpack.c.l.b16 %v99
  %v304 = vunpack.c.h.b16 %v99
  %v305 = vunpack.c.l.b16 %v100
  %v306 = vunpack.c.h.b16 %v100
  %v307 = vunpack.c.l.b16 %v101
  %v308 = vunpack.c.h.b16 %v101
  %v309 = vunpack.c.l.b16 %v102
  %v310 = vunpack.c.h.b16 %v102
  %v311 = vunpack.c.l.b16 %v103
  %v312 = vunpack.c.h.b16 %v103
  %v313 = vunpack.c.l.b16 %v104
  %v314 = vunpack.c.h.b16 %v104
  %v315 = vunpack.c.l.b16 %v105
  %v316 = vunpack.c.h.b16 %v105
  %v317 = vunpack.c.l.b16 %v106
  %v318 = vunpack.c.h.b16 %v106
  %v319 = vunpack.c.l.b16 %v107
  %v320 = vunpack.c.h.b16 %v107
  %v321 = vunpack.c.l.b16 %v108
  %v322 = vunpack.c.h.b16 %v108
  %v323 = vunpack.c.l.b16 %v109
  %v324 = vunpack.c.h.b16 %v109
  %v325 = vunpack.c.l.b16 %v110
  %v326 = vunpack.c.h.b16 %v110
  %v327 = vunpack.c.l.b16 %v111
  %v328 = vunpack.c.h.b16 %v111
  %v329 = vunpack.c.l.b16 %v112
  %v330 = vunpack.c.h.b16 %v112
  %v331 = vpack.c.b16 %v205, %v203
  %v332 = vpack.c.b16 %v206, %v204
  %v333 = vpack.c.b16 %v209, %v207
  %v334 = vpack.c.b16 %v210, %v208
  %v335 = vpack.c.b16 %v213, %v211
  %v336 = vpack.c.b16 %v214, %v212
  %v337 = vpack.c.b16 %v217, %v215
  %v338 = vpack.c.b16 %v218, %v216
  %v339 = vpack.c.b16 %v221, %v219
  %v340 = vpack.c.b16 %v222, %v220
  %v341 = vpack.c.b16 %v225, %v223
  %v342 = vpack.c.b16 %v226, %v224
  %v343 = vpack.c.b16 %v229, %v227
  %v344 = vpack.c.b16 %v230, %v228
  %v345 = vpack.c.b16 %v233, %v231
  %v346 = vpack.c.b16 %v234, %v232
  %v347 = vpack.c.b16 %v237, %v235
  %v348 = vpack.c.b16 %v238, %v236
  %v349 = vpack.c.b16 %v241, %v239
  %v350 = vpack.c.b16 %v242, %v240
  %v351 = vpack.c.b16 %v245, %v243
  %v352 = vpack.c.b16 %v246, %v244
  %v353 = vpack.c.b16 %v249, %v247
  %v354 = vpack.c.b16 %v250, %v248
  %v355 = vpack.c.b16 %v253, %v251
  %v356 = vpack.c.b16 %v254, %v252
  %v357 = vpack.c.b16 %v257, %v255
  %v358 = vpack.c.b16 %v258, %v256
  %v359 = vpack.c.b16 %v261, %v259
  %v360 = vpack.c.b16 %v262, %v260
  %v361 = vpack.c.b16 %v265, %v263
  %v362 = vpack.c.b16 %v266, %v264
  %v363 = vpack.c.b16 %v269, %v267
  %v364 = vpack.c.b16 %v270, %v268
  %v365 = vpack.c.b16 %v273, %v271
  %v366 = vpack.c.b16 %v274, %v272
  %v367 = vpack.c.b16 %v277, %v275
  %v368 = vpack.c.b16 %v278, %v276
  %v369 = vpack.c.b16 %v281, %v279
  %v370 = vpack.c.b16 %v282, %v280
  %v371 = vpack.c.b16 %v285, %v283
  %v372 = vpack.c.b16 %v286, %v284
  %v373 = vpack.c.b16 %v289, %v287
  %v374 = vpack.c.b16 %v290, %v288
  %v375 = vpack.c.b16 %v293, %v291
  %v376 = vpack.c.b16 %v294, %v292
  %v377 = vpack.c.b16 %v297, %v295
  %v378 = vpack.c.b16 %v298, %v296
  %v379 = vpack.c.b16 %v301, %v299
  %v380 = vpack.c.b16 %v302, %v300
  %v381 = vpack.c.b16 %v305, %v303
  %v382 = vpack.c.b16 %v306, %v304
  %v383 = vpack.c.b16 %v309, %v307
  %v384 = vpack.c.b16 %v310, %v308
  %v385 = vpack.c.b16 %v313, %v311
  %v386 = vpack.c.b16 %v314, %v312
  %v387 = vpack.c.b16 %v317, %v315
  %v388 = vpack.c.b16 %v318, %v316
  %v389 = vpack.c.b16 %v321, %v319
  %v390 = vpack.c.b16 %v322, %v320
  %v391 = vpack.c.b16 %v325, %v323
  %v392 = vpack.c.b16 %v326, %v324
  %v393 = vpack.c.b16 %v329, %v327
  %v394 = vpack.c.b16 %v330, %v328
  %459 = vmatpush.bf16.msra.mxu0 %v345
  %460 = vmatpush.bf16.msra.mxu0 %v343
  %461 = vmatpush.bf16.msra.mxu0 %v341
  %462 = vmatpush.bf16.msra.mxu0 %v339
  %463 = vmatpush.bf16.msra.mxu0 %v337
  %464 = vmatpush.bf16.msra.mxu0 %v335
  %465 = vmatpush.bf16.msra.mxu0 %v333
  %466 = vmatpush.bf16.msra.mxu0 %v331
  %467 = vmatmul.bf16.gmra.mxu0 %v131
  %v468 = vpop.f32.mrf.mxu0
  %v469 = vadd.f32 %v115, %v468
  %v470 = vpop.f32.mrf.mxu0
  %v471 = vadd.f32 %v115, %v470
  %472 = vdwg.mxu0
  %473 = vmatpush.bf16.msra.mxu0 %v361
  %474 = vmatpush.bf16.msra.mxu0 %v359
  %475 = vmatpush.bf16.msra.mxu0 %v357
  %476 = vmatpush.bf16.msra.mxu0 %v355
  %477 = vmatpush.bf16.msra.mxu0 %v353
  %478 = vmatpush.bf16.msra.mxu0 %v351
  %479 = vmatpush.bf16.msra.mxu0 %v349
  %480 = vmatpush.bf16.msra.mxu0 %v347
  %481 = vmatmul.bf16.gmra.mxu0 %v132
  %v482 = vpop.f32.mrf.mxu0
  %v483 = vadd.f32 %v469, %v482
  %v484 = vpop.f32.mrf.mxu0
  %v485 = vadd.f32 %v471, %v484
  %486 = vdwg.mxu0
  %487 = vmatpush.bf16.msra.mxu0 %v377
  %488 = vmatpush.bf16.msra.mxu0 %v375
  %489 = vmatpush.bf16.msra.mxu0 %v373
  %490 = vmatpush.bf16.msra.mxu0 %v371
  %491 = vmatpush.bf16.msra.mxu0 %v369
  %492 = vmatpush.bf16.msra.mxu0 %v367
  %493 = vmatpush.bf16.msra.mxu0 %v365
  %494 = vmatpush.bf16.msra.mxu0 %v363
  %495 = vmatmul.bf16.gmra.mxu0 %v133
  %v496 = vpop.f32.mrf.mxu0
  %v497 = vadd.f32 %v483, %v496
  %v498 = vpop.f32.mrf.mxu0
  %v499 = vadd.f32 %v485, %v498
  %500 = vdwg.mxu0
  %501 = vmatpush.bf16.msra.mxu0 %v393
  %502 = vmatpush.bf16.msra.mxu0 %v391
  %503 = vmatpush.bf16.msra.mxu0 %v389
  %504 = vmatpush.bf16.msra.mxu0 %v387
  %505 = vmatpush.bf16.msra.mxu0 %v385
  %506 = vmatpush.bf16.msra.mxu0 %v383
  %507 = vmatpush.bf16.msra.mxu0 %v381
  %508 = vmatpush.bf16.msra.mxu0 %v379
  %509 = vmatmul.bf16.gmra.mxu0 %v134
  %v510 = vpop.f32.mrf.mxu0
  %v511 = vadd.f32 %v497, %v510
  %v512 = vpop.f32.mrf.mxu0
  %v513 = vadd.f32 %v499, %v512
  %514 = vdwg.mxu0
  %515 = vmatpush.bf16.msra.mxu0 %v346
  %516 = vmatpush.bf16.msra.mxu0 %v344
  %517 = vmatpush.bf16.msra.mxu0 %v342
  %518 = vmatpush.bf16.msra.mxu0 %v340
  %519 = vmatpush.bf16.msra.mxu0 %v338
  %520 = vmatpush.bf16.msra.mxu0 %v336
  %521 = vmatpush.bf16.msra.mxu0 %v334
  %522 = vmatpush.bf16.msra.mxu0 %v332
  %523 = vmatmul.bf16.gmra.mxu0 %v131
  %v524 = vpop.f32.mrf.mxu0
  %v525 = vadd.f32 %v116, %v524
  %v526 = vpop.f32.mrf.mxu0
  %v527 = vadd.f32 %v116, %v526
  %528 = vdwg.mxu0
  %529 = vmatpush.bf16.msra.mxu0 %v362
  %530 = vmatpush.bf16.msra.mxu0 %v360
  %531 = vmatpush.bf16.msra.mxu0 %v358
  %532 = vmatpush.bf16.msra.mxu0 %v356
  %533 = vmatpush.bf16.msra.mxu0 %v354
  %534 = vmatpush.bf16.msra.mxu0 %v352
  %535 = vmatpush.bf16.msra.mxu0 %v350
  %536 = vmatpush.bf16.msra.mxu0 %v348
  %537 = vmatmul.bf16.gmra.mxu0 %v132
  %v538 = vpop.f32.mrf.mxu0
  %v539 = vadd.f32 %v525, %v538
  %v540 = vpop.f32.mrf.mxu0
  %v541 = vadd.f32 %v527, %v540
  %542 = vdwg.mxu0
  %543 = vmatpush.bf16.msra.mxu0 %v378
  %544 = vmatpush.bf16.msra.mxu0 %v376
  %545 = vmatpush.bf16.msra.mxu0 %v374
  %546 = vmatpush.bf16.msra.mxu0 %v372
  %547 = vmatpush.bf16.msra.mxu0 %v370
  %548 = vmatpush.bf16.msra.mxu0 %v368
  %549 = vmatpush.bf16.msra.mxu0 %v366
  %550 = vmatpush.bf16.msra.mxu0 %v364
  %551 = vmatmul.bf16.gmra.mxu0 %v133
  %v552 = vpop.f32.mrf.mxu0
  %v553 = vadd.f32 %v539, %v552
  %v554 = vpop.f32.mrf.mxu0
  %v555 = vadd.f32 %v541, %v554
  %556 = vdwg.mxu0
  %557 = vmatpush.bf16.msra.mxu0 %v394
  %558 = vmatpush.bf16.msra.mxu0 %v392
  %559 = vmatpush.bf16.msra.mxu0 %v390
  %560 = vmatpush.bf16.msra.mxu0 %v388
  %561 = vmatpush.bf16.msra.mxu0 %v386
  %562 = vmatpush.bf16.msra.mxu0 %v384
  %563 = vmatpush.bf16.msra.mxu0 %v382
  %564 = vmatpush.bf16.msra.mxu0 %v380
  %565 = vmatmul.bf16.gmra.mxu0 %v134
  %v566 = vpop.f32.mrf.mxu0
  %v567 = vadd.f32 %v553, %v566
  %v568 = vpop.f32.mrf.mxu0
  %v569 = vadd.f32 %v555, %v568
  %570 = vdwg.mxu0
  %v571 = vmul.f32 %v511, 0.05
  %v572 = vmul.f32 %v567, 0.05
  %v573 = vmul.f32 %v513, 0.05
  %v574 = vmul.f32 %v569, 0.05
  %v575 = vmax.f32 %v511, %v571
  %v576 = vmax.f32 %v567, %v572
  %v577 = vmax.f32 %v513, %v573
  %v578 = vmax.f32 %v569, %v574
  %v579 = vpack.c.bf16 %v577, %v575
  %v580 = vpack.c.bf16 %v578, %v576
  %v581 = vld [vmem:[%s3] sm:$0xff]
  %v582 = vld [vmem:[%s3 + $0x8] sm:$0xff]
  %v583 = vld [vmem:[%s3 + $0x10] sm:$0xff]
  %v584 = vld [vmem:[%s3 + $0x18] sm:$0xff]
  %v585 = vld [vmem:[%s3 + $0x20] sm:$0xff]
  %v586 = vld [vmem:[%s3 + $0x28] sm:$0xff]
  %v587 = vld [vmem:[%s3 + $0x30] sm:$0xff]
  %v588 = vld [vmem:[%s3 + $0x38] sm:$0xff]
  %v589 = vld [vmem:[%s3 + $0x40] sm:$0xff]
  %v590 = vld [vmem:[%s3 + $0x48] sm:$0xff]
  %v591 = vld [vmem:[%s3 + $0x50] sm:$0xff]
  %v592 = vld [vmem:[%s3 + $0x58] sm:$0xff]
  %v593 = vld [vmem:[%s3 + $0x60] sm:$0xff]
  %v594 = vld [vmem:[%s3 + $0x68] sm:$0xff]
  %v595 = vld [vmem:[%s3 + $0x70] sm:$0xff]
  %v596 = vld [vmem:[%s3 + $0x78] sm:$0xff]
  %v597 = vld [vmem:[%s3 + $0x80] sm:$0xff]
  %v598 = vld [vmem:[%s3 + $0x88] sm:$0xff]
  %v599 = vld [vmem:[%s3 + $0x90] sm:$0xff]
  %v600 = vld [vmem:[%s3 + $0x98] sm:$0xff]
  %v601 = vld [vmem:[%s4] sm:$0x3]
  %v603 = vperm.slane %v601, 0
  %v604 = vperm.slane %v601, 1
  %v627 = vunpack.c.l.b16 %v581
  %v628 = vunpack.c.h.b16 %v581
  %v629 = vunpack.c.l.b16 %v582
  %v630 = vunpack.c.h.b16 %v582
  %v631 = vunpack.c.l.b16 %v583
  %v632 = vunpack.c.h.b16 %v583
  %v633 = vunpack.c.l.b16 %v584
  %v634 = vunpack.c.h.b16 %v584
  %v635 = vunpack.c.l.b16 %v585
  %v636 = vunpack.c.h.b16 %v585
  %v637 = vunpack.c.l.b16 %v586
  %v638 = vunpack.c.h.b16 %v586
  %v639 = vunpack.c.l.b16 %v587
  %v640 = vunpack.c.h.b16 %v587
  %v641 = vunpack.c.l.b16 %v588
  %v642 = vunpack.c.h.b16 %v588
  %v643 = vunpack.c.l.b16 %v589
  %v644 = vunpack.c.h.b16 %v589
  %v645 = vunpack.c.l.b16 %v590
  %v646 = vunpack.c.h.b16 %v590
  %v647 = vunpack.c.l.b16 %v591
  %v648 = vunpack.c.h.b16 %v591
  %v649 = vunpack.c.l.b16 %v592
  %v650 = vunpack.c.h.b16 %v592
  %v651 = vunpack.c.l.b16 %v593
  %v652 = vunpack.c.h.b16 %v593
  %v653 = vunpack.c.l.b16 %v594
  %v654 = vunpack.c.h.b16 %v594
  %v655 = vunpack.c.l.b16 %v595
  %v656 = vunpack.c.h.b16 %v595
  %v657 = vunpack.c.l.b16 %v596
  %v658 = vunpack.c.h.b16 %v596
  %v659 = vunpack.c.l.b16 %v597
  %v660 = vunpack.c.h.b16 %v597
  %v661 = vunpack.c.l.b16 %v598
  %v662 = vunpack.c.h.b16 %v598
  %v663 = vunpack.c.l.b16 %v599
  %v664 = vunpack.c.h.b16 %v599
  %v665 = vunpack.c.l.b16 %v600
  %v666 = vunpack.c.h.b16 %v600
  %v667 = vpack.c.b16 %v629, %v627
  %v668 = vpack.c.b16 %v630, %v628
  %v669 = vpack.c.b16 %v633, %v631
  %v670 = vpack.c.b16 %v634, %v632
  %v671 = vpack.c.b16 %v637, %v635
  %v672 = vpack.c.b16 %v638, %v636
  %v673 = vpack.c.b16 %v641, %v639
  %v674 = vpack.c.b16 %v642, %v640
  %v675 = vpack.c.b16 %v645, %v643
  %v676 = vpack.c.b16 %v646, %v644
  %v677 = vpack.c.b16 %v649, %v647
  %v678 = vpack.c.b16 %v650, %v648
  %v679 = vpack.c.b16 %v653, %v651
  %v680 = vpack.c.b16 %v654, %v652
  %v681 = vpack.c.b16 %v657, %v655
  %v682 = vpack.c.b16 %v658, %v656
  %v683 = vpack.c.b16 %v661, %v659
  %v684 = vpack.c.b16 %v662, %v660
  %v685 = vpack.c.b16 %v665, %v663
  %v686 = vpack.c.b16 %v666, %v664
  %vm707 = vcmask 261120
  %v709 = vsel %vm707, %v580, 0
  %711 = vmatpush.bf16.msra.mxu0 %v681
  %712 = vmatpush.bf16.msra.mxu0 %v679
  %713 = vmatpush.bf16.msra.mxu0 %v677
  %714 = vmatpush.bf16.msra.mxu0 %v675
  %715 = vmatpush.bf16.msra.mxu0 %v673
  %716 = vmatpush.bf16.msra.mxu0 %v671
  %717 = vmatpush.bf16.msra.mxu0 %v669
  %718 = vmatpush.bf16.msra.mxu0 %v667
  %719 = vmatmul.bf16.gmra.mxu0 %v579
  %v720 = vpop.f32.mrf.mxu0
  %v721 = vadd.f32 %v603, %v720
  %v722 = vpop.f32.mrf.mxu0
  %v723 = vadd.f32 %v603, %v722
  %724 = vdwg.mxu0
  %725 = vmatpush.bf16.msra.mxu0 0
  %726 = vmatpush.bf16.msra.mxu0 0
  %727 = vmatpush.bf16.msra.mxu0 0
  %728 = vmatpush.bf16.msra.mxu0 0
  %729 = vmatpush.bf16.msra.mxu0 0
  %730 = vmatpush.bf16.msra.mxu0 0
  %731 = vmatpush.bf16.msra.mxu0 %v685
  %732 = vmatpush.bf16.msra.mxu0 %v683
  %733 = vmatmul.bf16.gmra.mxu0 %v709
  %v734 = vpop.f32.mrf.mxu0
  %v735 = vadd.f32 %v721, %v734
  %v736 = vpop.f32.mrf.mxu0
  %v737 = vadd.f32 %v723, %v736
  %738 = vdwg.mxu0
  %739 = vmatpush.bf16.msra.mxu0 %v682
  %740 = vmatpush.bf16.msra.mxu0 %v680
  %741 = vmatpush.bf16.msra.mxu0 %v678
  %742 = vmatpush.bf16.msra.mxu0 %v676
  %743 = vmatpush.bf16.msra.mxu0 %v674
  %744 = vmatpush.bf16.msra.mxu0 %v672
  %745 = vmatpush.bf16.msra.mxu0 %v670
  %746 = vmatpush.bf16.msra.mxu0 %v668
  %747 = vmatmul.bf16.gmra.mxu0 %v579
  %v748 = vpop.f32.mrf.mxu0
  %v749 = vadd.f32 %v604, %v748
  %v750 = vpop.f32.mrf.mxu0
  %v751 = vadd.f32 %v604, %v750
  %752 = vdwg.mxu0
  %753 = vmatpush.bf16.msra.mxu0 0
  %754 = vmatpush.bf16.msra.mxu0 0
  %755 = vmatpush.bf16.msra.mxu0 0
  %756 = vmatpush.bf16.msra.mxu0 0
  %757 = vmatpush.bf16.msra.mxu0 0
  %758 = vmatpush.bf16.msra.mxu0 0
  %759 = vmatpush.bf16.msra.mxu0 %v686
  %760 = vmatpush.bf16.msra.mxu0 %v684
  %761 = vmatmul.bf16.gmra.mxu0 %v709
  %v762 = vpop.f32.mrf.mxu0
  %v763 = vadd.f32 %v749, %v762
  %v764 = vpop.f32.mrf.mxu0
  %v765 = vadd.f32 %v751, %v764
  %766 = vdwg.mxu0
  %v767 = vmul.f32 %v735, 0.05
  %v768 = vmul.f32 %v763, 0.05
  %v769 = vmul.f32 %v737, 0.05
  %v770 = vmul.f32 %v765, 0.05
  %v771 = vmax.f32 %v735, %v767
  %v772 = vmax.f32 %v763, %v768
  %v773 = vmax.f32 %v737, %v769
  %v774 = vmax.f32 %v765, %v770
  %v775 = vpack.c.bf16 %v773, %v771
  %v776 = vpack.c.bf16 %v774, %v772
  %v777 = vld [vmem:[%s5] sm:$0xf]
  %v778 = vld [vmem:[%s5 + $0x4] sm:$0xf]
  %v779 = vld [vmem:[%s5 + $0x8] sm:$0xf]
  %v780 = vld [vmem:[%s5 + $0xc] sm:$0xf]
  %v781 = vld [vmem:[%s5 + $0x10] sm:$0xf]
  %v782 = vld [vmem:[%s5 + $0x14] sm:$0xf]
  %v783 = vld [vmem:[%s5 + $0x18] sm:$0xf]
  %v784 = vld [vmem:[%s5 + $0x1c] sm:$0xf]
  %v785 = vld [vmem:[%s5 + $0x20] sm:$0xf]
  %v786 = vld [vmem:[%s5 + $0x24] sm:$0xf]
  %v787 = vld [vmem:[%s5 + $0x28] sm:$0xf]
  %v788 = vld [vmem:[%s5 + $0x2c] sm:$0xf]
  %v789 = vld [vmem:[%s5 + $0x30] sm:$0xf]
  %v790 = vld [vmem:[%s5 + $0x34] sm:$0xf]
  %v791 = vld [vmem:[%s5 + $0x38] sm:$0xf]
  %v792 = vld [vmem:[%s5 + $0x3c] sm:$0xf]
  %v793 = vld [vmem:[%s5 + $0x40] sm:$0xf]
  %v794 = vld [vmem:[%s5 + $0x44] sm:$0xf]
  %v795 = vld [vmem:[%s5 + $0x48] sm:$0xf]
  %v796 = vld [vmem:[%s5 + $0x4c] sm:$0xf]
  %v797 = vld [vmem:[%s6] sm:$0x1]
  %v799 = vperm.slane %v797, 0
  %v821 = vunpack.c.l.b16 %v777
  %v822 = vunpack.c.l.b16 %v778
  %v823 = vunpack.c.l.b16 %v779
  %v824 = vunpack.c.l.b16 %v780
  %v825 = vunpack.c.l.b16 %v781
  %v826 = vunpack.c.l.b16 %v782
  %v827 = vunpack.c.l.b16 %v783
  %v828 = vunpack.c.l.b16 %v784
  %v829 = vunpack.c.l.b16 %v785
  %v830 = vunpack.c.l.b16 %v786
  %v831 = vunpack.c.l.b16 %v787
  %v832 = vunpack.c.l.b16 %v788
  %v833 = vunpack.c.l.b16 %v789
  %v834 = vunpack.c.l.b16 %v790
  %v835 = vunpack.c.l.b16 %v791
  %v836 = vunpack.c.l.b16 %v792
  %v837 = vunpack.c.l.b16 %v793
  %v838 = vunpack.c.l.b16 %v794
  %v839 = vunpack.c.l.b16 %v795
  %v840 = vunpack.c.l.b16 %v796
  %v841 = vpack.c.b16 %v822, %v821
  %v842 = vpack.c.b16 %v824, %v823
  %v843 = vpack.c.b16 %v826, %v825
  %v844 = vpack.c.b16 %v828, %v827
  %v845 = vpack.c.b16 %v830, %v829
  %v846 = vpack.c.b16 %v832, %v831
  %v847 = vpack.c.b16 %v834, %v833
  %v848 = vpack.c.b16 %v836, %v835
  %v849 = vpack.c.b16 %v838, %v837
  %v850 = vpack.c.b16 %v840, %v839
  %v862 = vsel %vm707, %v776, 0
  %864 = vmatpush.bf16.msra.mxu0 %v848
  %865 = vmatpush.bf16.msra.mxu0 %v847
  %866 = vmatpush.bf16.msra.mxu0 %v846
  %867 = vmatpush.bf16.msra.mxu0 %v845
  %868 = vmatpush.bf16.msra.mxu0 %v844
  %869 = vmatpush.bf16.msra.mxu0 %v843
  %870 = vmatpush.bf16.msra.mxu0 %v842
  %871 = vmatpush.bf16.msra.mxu0 %v841
  %872 = vmatmul.bf16.gmra.mxu0 %v775
  %v873 = vpop.f32.mrf.mxu0
  %v874 = vadd.f32 %v799, %v873
  %v875 = vpop.f32.mrf.mxu0
  %v876 = vadd.f32 %v799, %v875
  %877 = vdwg.mxu0
  %878 = vmatpush.bf16.msra.mxu0 0
  %879 = vmatpush.bf16.msra.mxu0 0
  %880 = vmatpush.bf16.msra.mxu0 0
  %881 = vmatpush.bf16.msra.mxu0 0
  %882 = vmatpush.bf16.msra.mxu0 0
  %883 = vmatpush.bf16.msra.mxu0 0
  %884 = vmatpush.bf16.msra.mxu0 %v850
  %885 = vmatpush.bf16.msra.mxu0 %v849
  %886 = vmatmul.bf16.gmra.mxu0 %v862
  %v887 = vpop.f32.mrf.mxu0
  %v888 = vadd.f32 %v874, %v887
  %v889 = vpop.f32.mrf.mxu0
  %v890 = vadd.f32 %v876, %v889
  %891 = vdwg.mxu0
  %v892 = vmul.f32 %v888, 0.05
  %v893 = vmul.f32 %v890, 0.05
  %v894 = vmax.f32 %v888, %v892
  %v895 = vmax.f32 %v890, %v893
  %v896 = vpack.c.bf16 %v895, %v894
  %v897 = vld [vmem:[%s7] sm:$0xf]
  %v898 = vld [vmem:[%s7 + $0x4] sm:$0xf]
  %v899 = vld [vmem:[%s7 + $0x8] sm:$0xf]
  %v900 = vld [vmem:[%s7 + $0xc] sm:$0xf]
  %v901 = vld [vmem:[%s7 + $0x10] sm:$0xf]
  %v902 = vld [vmem:[%s7 + $0x14] sm:$0xf]
  %v903 = vld [vmem:[%s7 + $0x18] sm:$0xf]
  %v904 = vld [vmem:[%s7 + $0x1c] sm:$0xf]
  %v905 = vld [vmem:[%s7 + $0x20] sm:$0xf]
  %v906 = vld [vmem:[%s7 + $0x24] sm:$0xf]
  %v907 = vld [vmem:[%s8] sm:$0x1]
  %v909 = vperm.slane %v907, 0
  %v921 = vunpack.c.l.b16 %v897
  %v922 = vunpack.c.l.b16 %v898
  %v923 = vunpack.c.l.b16 %v899
  %v924 = vunpack.c.l.b16 %v900
  %v925 = vunpack.c.l.b16 %v901
  %v926 = vunpack.c.l.b16 %v902
  %v927 = vunpack.c.l.b16 %v903
  %v928 = vunpack.c.l.b16 %v904
  %v929 = vunpack.c.l.b16 %v905
  %v930 = vunpack.c.l.b16 %v906
  %v931 = vpack.c.b16 %v922, %v921
  %v932 = vpack.c.b16 %v924, %v923
  %v933 = vpack.c.b16 %v926, %v925
  %v934 = vpack.c.b16 %v928, %v927
  %v935 = vpack.c.b16 %v930, %v929
  %vm941 = vcmask 654336
  %v943 = vsel %vm941, %v896, 0
  %945 = vmatpush.bf16.msra.mxu0 0
  %946 = vmatpush.bf16.msra.mxu0 0
  %947 = vmatpush.bf16.msra.mxu0 0
  %948 = vmatpush.bf16.msra.mxu0 %v935
  %949 = vmatpush.bf16.msra.mxu0 %v934
  %950 = vmatpush.bf16.msra.mxu0 %v933
  %951 = vmatpush.bf16.msra.mxu0 %v932
  %952 = vmatpush.bf16.msra.mxu0 %v931
  %953 = vmatmul.bf16.gmra.mxu0 %v943
  %v954 = vpop.f32.mrf.mxu0
  %v955 = vadd.f32 %v909, %v954
  %v956 = vpop.f32.mrf.mxu0
  %v957 = vadd.f32 %v909, %v956
  %958 = vdwg.mxu0
  %v959 = vmul.f32 %v955, 0.05
  %v960 = vmul.f32 %v957, 0.05
  %v961 = vmax.f32 %v955, %v959
  %v962 = vmax.f32 %v957, %v960
  %v963 = vpack.c.bf16 %v962, %v961
  %v964 = vld [vmem:[%s9] sm:$0xf]
  %v965 = vld [vmem:[%s9 + $0x4] sm:$0xf]
  %v966 = vld [vmem:[%s9 + $0x8] sm:$0xf]
  %v967 = vld [vmem:[%s9 + $0xc] sm:$0xf]
  %v968 = vld [vmem:[%s9 + $0x10] sm:$0xf]
  %v969 = vld [vmem:[%s10] sm:$0x1]
  %v971 = vperm.slane %v969, 0
  %v978 = vunpack.c.l.b16 %v964
  %v979 = vunpack.c.l.b16 %v965
  %v980 = vunpack.c.l.b16 %v966
  %v981 = vunpack.c.l.b16 %v967
  %v982 = vunpack.c.l.b16 %v968
  %v983 = vpack.c.b16 %v979, %v978
  %v984 = vpack.c.b16 %v981, %v980
  %v985 = vpack.c.b16 %v982, %v982
  %vm988 = vcmask 326656
  %v990 = vsel %vm988, %v963, 0
  %vm992 = vcmask 1043456
  %v994 = vsel %vm992, %v985, 0
  %996 = vmatpush.bf16.msra.mxu0 0
  %997 = vmatpush.bf16.msra.mxu0 0
  %998 = vmatpush.bf16.msra.mxu0 0
  %999 = vmatpush.bf16.msra.mxu0 0
  %1000 = vmatpush.bf16.msra.mxu0 0
  %1001 = vmatpush.bf16.msra.mxu0 %v994
  %1002 = vmatpush.bf16.msra.mxu0 %v984
  %1003 = vmatpush.bf16.msra.mxu0 %v983
  %1004 = vmatmul.bf16.gmra.mxu0 %v990
  %v1005 = vpop.f32.mrf.mxu0
  %v1006 = vadd.f32 %v971, %v1005
  %v1007 = vpop.f32.mrf.mxu0
  %v1008 = vadd.f32 %v971, %v1007
  %1009 = vdwg.mxu0
  %v1010 = vmul.f32 %v1006, 0.05
  %v1011 = vmul.f32 %v1008, 0.05
  %v1012 = vmax.f32 %v1006, %v1010
  %v1013 = vmax.f32 %v1008, %v1011
  %v1014 = vpack.c.bf16 %v1013, %v1012
  %v1015 = vld [vmem:[%s11] sm:$0xf]
  %v1016 = vld [vmem:[%s11 + $0x4] sm:$0xf]
  %v1017 = vld [vmem:[%s11 + $0x8] sm:$0xf]
  %v1018 = vld [vmem:[%s11 + $0xc] sm:$0xf]
  %v1019 = vld [vmem:[%s11 + $0x10] sm:$0xf]
  %v1020 = vld [vmem:[%s11 + $0x14] sm:$0xf]
  %v1021 = vld [vmem:[%s11 + $0x18] sm:$0xf]
  %v1022 = vld [vmem:[%s11 + $0x1c] sm:$0x3]
  %v1023 = vld [vmem:[%s12] sm:$0x1]
  %v1025 = vperm.slane %v1023, 0
  %v1035 = vunpack.c.l.b16 %v1015
  %v1036 = vunpack.c.l.b16 %v1016
  %v1037 = vunpack.c.l.b16 %v1017
  %v1038 = vunpack.c.l.b16 %v1018
  %v1039 = vunpack.c.l.b16 %v1019
  %v1040 = vunpack.c.l.b16 %v1020
  %v1041 = vunpack.c.l.b16 %v1021
  %v1042 = vunpack.c.l.b16 %v1022
  %v1043 = vpack.c.b16 %v1036, %v1035
  %v1044 = vpack.c.b16 %v1038, %v1037
  %v1045 = vpack.c.b16 %v1040, %v1039
  %v1046 = vpack.c.b16 %v1042, %v1041
  %vm1050 = vcmask 490496
  %v1052 = vsel %vm1050, %v1014, 0
  %vm1054 = vcmask 1045504
  %v1056 = vsel %vm1054, %v1046, 0
  %1058 = vmatpush.bf16.msra.mxu0 0
  %1059 = vmatpush.bf16.msra.mxu0 0
  %1060 = vmatpush.bf16.msra.mxu0 0
  %1061 = vmatpush.bf16.msra.mxu0 0
  %1062 = vmatpush.bf16.msra.mxu0 %v1056
  %1063 = vmatpush.bf16.msra.mxu0 %v1045
  %1064 = vmatpush.bf16.msra.mxu0 %v1044
  %1065 = vmatpush.bf16.msra.mxu0 %v1043
  %1066 = vmatmul.bf16.gmra.mxu0 %v1052
  %v1067 = vpop.f32.mrf.mxu0
  %v1068 = vadd.f32 %v1025, %v1067
  %v1069 = vpop.f32.mrf.mxu0
  %v1070 = vadd.f32 %v1025, %v1069
  %1071 = vdwg.mxu0
  %v1072 = vand.u32 2147483647, %v1068
  %v1073 = vand.u32 2147483647, %v1070
  %v1074 = vsub.f32 0.0, %v1072
  %v1075 = vsub.f32 0.0, %v1073
  %v1076 = vmul.f32 %v1074, 1.442695
  %v1077 = vpow.pop %v1076
  %v1078 = vmul.f32 %v1075, 1.442695
  %v1079 = vpow.pop %v1078
  %v1080 = vadd.f32 %v1077, 1.0
  %v1081 = vadd.f32 %v1079, 1.0
  %v1082 = vrcp.pop %v1080
  %v1083 = vrcp.pop %v1081
  %vm1084 = vcmp.ge.f32.partialorder %v1068, 0.0
  %vm1085 = vcmp.ge.f32.partialorder %v1070, 0.0
  %v1086 = vmul.f32 %v1077, %v1082
  %v1087 = vmul.f32 %v1079, %v1083
  %v1088 = vsel %vm1084, %v1082, %v1086
  %v1089 = vsel %vm1085, %v1083, %v1087
  %vm1090 = vcmask 23552
  %1091 = vst.msk [vmem:[%s13] sm:$0xff] %vm1090, %v1088
  %1092 = vst.msk [vmem:[%s13 + $0x8] sm:$0xff] %vm1090, %v1089
  // Predicated region
  $region54: #{tpu_custom_call.1} parent=0 // pred_check
    _
  $region55: #{tpu_custom_call.1} parent=0 // pred_check_branch
    %1094 = sbr.rel (0) target = $region57
  $region56: #{tpu_custom_call.1} parent=0 // pred_region
    _
  $region57: #{tpu_custom_call.1} parent=0 // pred_fallthru
    _
  // Predicated region
  $region58: #{tpu_custom_call.1} parent=0 // pred_check
    _
  $region59: #{tpu_custom_call.1} parent=0 // pred_check_branch
    %1096 = sbr.rel (0) target = $region61
  $region60: #{tpu_custom_call.1} parent=0 // pred_region
    _
  $region61: #{tpu_custom_call.1} parent=0 // pred_fallthru
    _

</llo_original>
